<compile_context>
chip_gen: v6e
topology: v6e:2x2x1
jax: 0.10.0
libtpu: 0.0.40
codegen_flags: <defaults>
</compile_context>

<pallas_src>
import math

import jax
import jax.numpy as jnp
from jax.experimental import pallas as pl
from jax.experimental.pallas import tpu as pltpu


_GELU_C = math.sqrt(2.0 / math.pi)


def _mlp_kernel(x_ref, wfc_ref, bfc_ref, wproj_ref, bproj_ref, o_ref, acc_ref):
    # x_ref:     (tm, D)          wfc_ref:   (D, th)     bfc_ref:   (1, th)
    # wproj_ref: (th, D)          bproj_ref: (1, D)
    # o_ref:     (tm, D)          acc_ref:   (tm, D) f32 scratch
    h_idx = pl.program_id(1)

    @pl.when(h_idx == 0)
    def _init():
        # Start the accumulator from the broadcast output bias.
        acc_ref[...] = jnp.broadcast_to(
            bproj_ref[...], acc_ref.shape).astype(jnp.float32)

    # Partial c_fc: x @ W_fc[:, chunk] + b_fc[chunk]  (MXU, f32 accumulation).
    h = jnp.dot(x_ref[...], wfc_ref[...], preferred_element_type=jnp.float32)
    h = h + bfc_ref[...]

    # tanh-approx GELU in f32 (matches nn.GELU(approximate='tanh'); safe on v5e).
    # Inner term factored as h * (1 + c*h^2) to save one tm*th-wide multiply.
    # TODO(synk): on v6e/v7x the polynomial/tanh could run in bf16 to halve VALU work.
    h = 0.5 * h * (1.0 + jnp.tanh(_GELU_C * h * (1.0 + 0.044715 * h * h)))

    # Partial c_proj: accumulate gelu(h_chunk) @ W_proj[chunk, :] in f32.
    acc_ref[...] += jnp.dot(h.astype(wproj_ref.dtype), wproj_ref[...],
                            preferred_element_type=jnp.float32)

    @pl.when(h_idx == pl.num_programs(1) - 1)
    def _finalize():
        o_ref[...] = acc_ref[...].astype(o_ref.dtype)


def _round_up(x, m):
    return ((x + m - 1) // m) * m


def _nbytes(shape, dtype):
    return math.prod(shape) * jnp.dtype(dtype).itemsize


def _pick_h_chunk(H, requested):
    """Largest multiple of 128 that exactly divides H and is <= requested (else H)."""
    if H <= requested or H % 128 != 0:
        return H
    n = H // 128
    best = None
    for d in range(1, n + 1):
        if n % d == 0 and d * 128 <= requested:
            best = d * 128
    return best if best is not None else H


def _vmem_capacity_bytes():
    try:
        cap = getattr(pltpu.get_tpu_info(), "vmem_capacity_bytes", None)
        if cap:
            return int(cap)
    except Exception:
        pass
    return 64 << 20  # conservative fallback: v7x per-TensorCore VMEM


def mlp_pallas(x, w_fc, b_fc, w_proj, b_proj, *,
               tm=512, th=1536, matmul_dtype=jnp.bfloat16,
               vmem_limit_bytes=None):
    """Fused GPT-2 MLP.

    x: [B, T, D]; w_fc: [D, 4D]; b_fc: [4D]; w_proj: [4D, D]; b_proj: [D].
    Weights are stored pre-transposed as [in, out] so the kernel computes
    y = x @ W + b (equivalent to PyTorch's x @ W.T + b).  For production, cast
    the weights to `matmul_dtype` ONCE at init and pass them in directly (the
    astypes below are no-ops when dtypes already match).
    """
    B, T, D = x.shape
    H = w_fc.shape[1]
    M = B * T
    out_dtype = x.dtype
    matmul_dtype = jnp.dtype(matmul_dtype)

    # Row tile: sublane multiple (16 for packed bf16 operands, 8 for f32),
    # clamped to the (rounded) row count.  No padded copy of x is built: the
    # ragged last row-block is handled by Pallas masked stores.
    row_mult = 16 if matmul_dtype.itemsize < 4 else 8
    tm = max(row_mult, min(_round_up(tm, row_mult), _round_up(M, row_mult)))
    # Hidden chunk: exact divisor of H (multiple of 128) so no out-of-bounds
    # hidden columns can contribute to the accumulator.
    th = _pick_h_chunk(H, th)

    n_i = pl.cdiv(M, tm)
    n_h = H // th
    grid = (n_i, n_h)

    x2 = x.reshape(M, D)
    x2 = x2 if x2.dtype == matmul_dtype else x2.astype(matmul_dtype)
    wfc = w_fc if w_fc.dtype == matmul_dtype else w_fc.astype(matmul_dtype)
    wproj = w_proj if w_proj.dtype == matmul_dtype else w_proj.astype(matmul_dtype)
    bfc2 = b_fc.reshape(1, H).astype(jnp.float32)
    bproj2 = b_proj.reshape(1, D).astype(jnp.float32)

    if vmem_limit_bytes is None:
        est = int(
            2 * _nbytes((tm, D), matmul_dtype)             # x tile (double buffered)
            + 2 * _nbytes((D, th), matmul_dtype)           # W_fc chunk
            + 2 * _nbytes((th, D), matmul_dtype)           # W_proj chunk
            + 2 * (_nbytes((1, th), jnp.float32) + _nbytes((1, D), jnp.float32))
            + 2 * _nbytes((tm, D), out_dtype)              # output tile
            + _nbytes((tm, D), jnp.float32)                # accumulator scratch
            + 2 * _nbytes((tm, th), jnp.float32)           # hidden intermediate
            + (16 << 20))                                  # compiler temporaries
        vmem_limit_bytes = min(est, int(_vmem_capacity_bytes() * 0.85))

    w_bytes = matmul_dtype.itemsize
    cost = pl.CostEstimate(
        flops=int(4 * M * D * H),                          # two matmuls
        transcendentals=int(M * H),                        # tanh per hidden element
        bytes_accessed=int(
            _nbytes((M, D), matmul_dtype)                  # x
            + int(n_i) * 2 * D * H * w_bytes               # weight chunks per row block
            + (H + D) * 4                                  # biases
            + _nbytes((M, D), out_dtype)),                 # output
    )

    out = pl.pallas_call(
        _mlp_kernel,
        out_shape=jax.ShapeDtypeStruct((M, D), out_dtype),
        grid_spec=pltpu.PrefetchScalarGridSpec(
            num_scalar_prefetch=0,
            grid=grid,
            in_specs=[
                pl.BlockSpec((tm, D), lambda i, h: (i, 0)),   # x rows (held across h)
                pl.BlockSpec((D, th), lambda i, h: (0, h)),   # W_fc chunk (streamed)
                pl.BlockSpec((1, th), lambda i, h: (0, h)),   # b_fc chunk
                pl.BlockSpec((th, D), lambda i, h: (h, 0)),   # W_proj chunk (streamed)
                pl.BlockSpec((1, D), lambda i, h: (0, 0)),    # b_proj
            ],
            out_specs=pl.BlockSpec((tm, D), lambda i, h: (i, 0)),
            scratch_shapes=[pltpu.VMEM((tm, D), jnp.float32)],
        ),
        compiler_params=pltpu.CompilerParams(
            dimension_semantics=("parallel", "arbitrary"),
            vmem_limit_bytes=int(vmem_limit_bytes),
        ),
        cost_estimate=cost,
    )(x2, wfc, bfc2, wproj, bproj2)

    return out.reshape(B, T, D)


def mlp_reference(x, w_fc, b_fc, w_proj, b_proj):
    h = x @ w_fc + b_fc
    h = 0.5 * h * (1.0 + jnp.tanh(_GELU_C * (h + 0.044715 * h ** 3)))
    return h @ w_proj + b_proj


if __name__ == "__main__":
    # Small config consistent with the module: D=32, hidden=4*32.
    B, T, D = 2, 8, 32
    H = 4 * D

    key = jax.random.PRNGKey(0)
    kx, kwfc, kbfc, kwp, kbp = jax.random.split(key, 5)

    x = jax.random.normal(kx, (B, T, D), dtype=jnp.float32)
    # PyTorch Linear weight is [out, in]; we store transposed [in, out].
    w_fc = jax.random.normal(kwfc, (D, H), dtype=jnp.float32) * 0.02
    b_fc = jax.random.normal(kbfc, (H,), dtype=jnp.float32) * 0.02
    w_proj = jax.random.normal(kwp, (H, D), dtype=jnp.float32) * 0.02
    b_proj = jax.random.normal(kbp, (D,), dtype=jnp.float32) * 0.02

    ref = mlp_reference(x, w_fc, b_fc, w_proj, b_proj)

    # Production path: weights pre-cast to bf16 ONCE (outside the call),
    # f32 accumulation + f32 tanh-GELU inside the kernel.
    w_fc_bf16 = w_fc.astype(jnp.bfloat16)
    w_proj_bf16 = w_proj.astype(jnp.bfloat16)
    out_bf16 = jax.block_until_ready(
        mlp_pallas(x, w_fc_bf16, b_fc, w_proj_bf16, b_proj))
    assert out_bf16.shape == (B, T, D)
    assert jnp.allclose(out_bf16, ref, atol=2e-2, rtol=2e-2)

    # Full-f32 path: tight numerical check of the fused semantics.
    out_f32 = jax.block_until_ready(
        mlp_pallas(x, w_fc, b_fc, w_proj, b_proj, matmul_dtype=jnp.float32))
    assert jnp.allclose(out_f32, ref, atol=1e-5, rtol=1e-5)

    # Ragged B*T (not a multiple of the row tile) exercises the masked last block.
    x_r = jax.random.normal(kx, (2, 5, D), dtype=jnp.float32)
    ref_r = mlp_reference(x_r, w_fc, b_fc, w_proj, b_proj)
    out_r = jax.block_until_ready(
        mlp_pallas(x_r, w_fc, b_fc, w_proj, b_proj, matmul_dtype=jnp.float32))
    assert out_r.shape == (2, 5, D)
    assert jnp.allclose(out_r, ref_r, atol=1e-5, rtol=1e-5)

    print("KERNEL_OK")
</pallas_src>

<mosaic_0001>
module attributes {stable_mosaic.version = 11 : i64} {
  func.func @_mlp_kernel(%arg0: i32, %arg1: i32, %arg2: memref<16x32xbf16, #tpu.memory_space<vmem>>, %arg3: memref<32x128xbf16, #tpu.memory_space<vmem>>, %arg4: memref<1x128xf32, #tpu.memory_space<vmem>>, %arg5: memref<128x32xbf16, #tpu.memory_space<vmem>>, %arg6: memref<1x32xf32, #tpu.memory_space<vmem>>, %arg7: memref<16x32xf32, #tpu.memory_space<vmem>>, %arg8: memref<16x32xf32, #tpu.memory_space<vmem>>) attributes {dimension_semantics = [#tpu.dimension_semantics<parallel>, #tpu.dimension_semantics<arbitrary>], iteration_bounds = array<i64: 1, 1>, scalar_prefetch = 0 : i64, scratch_operands = 1 : i64, tpu.core_type = #tpu.core_type<tc>, window_params = [{transform_indices = @transform_0, window_bounds = array<i64: 16, 32>}, {transform_indices = @transform_1, window_bounds = array<i64: 32, 128>}, {transform_indices = @transform_2, window_bounds = array<i64: 1, 128>}, {transform_indices = @transform_3, window_bounds = array<i64: 128, 32>}, {pipeline_mode = #tpu.pipeline_mode<synchronous>, transform_indices = @transform_4, window_bounds = array<i64: 1, 32>}, {transform_indices = @transform_5, window_bounds = array<i64: 16, 32>}]} {
    %c0_i32 = arith.constant 0 : i32
    %0 = arith.cmpi eq, %arg1, %c0_i32 : i32
    %1 = arith.extui %0 : i1 to i32
    %c0_i32_0 = arith.constant 0 : i32
    %2 = arith.cmpi ne, %1, %c0_i32_0 : i32
    scf.if %2 {
      %c0_20 = arith.constant 0 : index
      %c0_21 = arith.constant 0 : index
      %32 = vector.load %arg6[%c0_20, %c0_21] : memref<1x32xf32, #tpu.memory_space<vmem>>, vector<1x32xf32>
      %33 = vector.shape_cast %32 : vector<1x32xf32> to vector<1x32xf32>
      %34 = vector.broadcast %33 : vector<1x32xf32> to vector<16x32xf32>
      %c0_22 = arith.constant 0 : index
      %c0_23 = arith.constant 0 : index
      %35 = vector.load %arg8[%c0_22, %c0_23] : memref<16x32xf32, #tpu.memory_space<vmem>>, vector<16x32xf32>
      tpu.vector_store %arg8[%c0_22, %c0_23], %34 {strides = array<i32>} : memref<16x32xf32, #tpu.memory_space<vmem>>, vector<16x32xf32>,
    } else {
    }
    %c0 = arith.constant 0 : index
    %c0_1 = arith.constant 0 : index
    %3 = vector.load %arg2[%c0, %c0_1] : memref<16x32xbf16, #tpu.memory_space<vmem>>, vector<16x32xbf16>
    %c0_2 = arith.constant 0 : index
    %c0_3 = arith.constant 0 : index
    %4 = vector.load %arg3[%c0_2, %c0_3] : memref<32x128xbf16, #tpu.memory_space<vmem>>, vector<32x128xbf16>
    %cst = arith.constant dense<0.000000e+00> : vector<16x128xf32>
    %5 = tpu.matmul %3, %4, %cst {dimension_numbers = #tpu.dot_dimension_numbers<[1], [0], [0], [1], [0, 0, 1, 1], [], []>} : vector<16x32xbf16>, vector<32x128xbf16>, vector<16x128xf32> -> vector<16x128xf32>
    %c0_4 = arith.constant 0 : index
    %c0_5 = arith.constant 0 : index
    %6 = vector.load %arg4[%c0_4, %c0_5] : memref<1x128xf32, #tpu.memory_space<vmem>>, vector<1x128xf32>
    %7 = vector.broadcast %6 : vector<1x128xf32> to vector<16x128xf32>
    %8 = arith.addf %5, %7 : vector<16x128xf32>
    %cst_6 = arith.constant 5.000000e-01 : f32
    %9 = vector.broadcast %cst_6 : f32 to vector<16x128xf32>
    %10 = arith.mulf %9, %8 : vector<16x128xf32>
    %cst_7 = arith.constant 0.797884583 : f32
    %11 = vector.broadcast %cst_7 : f32 to vector<16x128xf32>
    %12 = arith.mulf %11, %8 : vector<16x128xf32>
    %cst_8 = arith.constant 4.471500e-02 : f32
    %13 = vector.broadcast %cst_8 : f32 to vector<16x128xf32>
    %14 = arith.mulf %13, %8 : vector<16x128xf32>
    %15 = arith.mulf %14, %8 : vector<16x128xf32>
    %cst_9 = arith.constant 1.000000e+00 : f32
    %16 = vector.broadcast %cst_9 : f32 to vector<16x128xf32>
    %17 = arith.addf %16, %15 : vector<16x128xf32>
    %18 = arith.mulf %12, %17 : vector<16x128xf32>
    %19 = math.tanh %18 : vector<16x128xf32>
    %cst_10 = arith.constant 1.000000e+00 : f32
    %20 = vector.broadcast %cst_10 : f32 to vector<16x128xf32>
    %21 = arith.addf %20, %19 : vector<16x128xf32>
    %22 = arith.mulf %10, %21 : vector<16x128xf32>
    %c0_11 = arith.constant 0 : index
    %c0_12 = arith.constant 0 : index
    %23 = vector.load %arg8[%c0_11, %c0_12] : memref<16x32xf32, #tpu.memory_space<vmem>>, vector<16x32xf32>
    %24 = arith.truncf %22 : vector<16x128xf32> to vector<16x128xbf16>
    %c0_13 = arith.constant 0 : index
    %c0_14 = arith.constant 0 : index
    %25 = vector.load %arg5[%c0_13, %c0_14] : memref<128x32xbf16, #tpu.memory_space<vmem>>, vector<128x32xbf16>
    %cst_15 = arith.constant dense<0.000000e+00> : vector<16x32xf32>
    %26 = tpu.matmul %24, %25, %cst_15 {dimension_numbers = #tpu.dot_dimension_numbers<[1], [0], [0], [1], [0, 0, 1, 1], [], []>} : vector<16x128xbf16>, vector<128x32xbf16>, vector<16x32xf32> -> vector<16x32xf32>
    %27 = arith.addf %23, %26 : vector<16x32xf32>
    %c0_16 = arith.constant 0 : index
    %c0_17 = arith.constant 0 : index
    %28 = vector.load %arg8[%c0_16, %c0_17] : memref<16x32xf32, #tpu.memory_space<vmem>>, vector<16x32xf32>
    tpu.vector_store %arg8[%c0_16, %c0_17], %27 {strides = array<i32>} : memref<16x32xf32, #tpu.memory_space<vmem>>, vector<16x32xf32>,
    %c0_i32_18 = arith.constant 0 : i32
    %29 = arith.cmpi eq, %arg1, %c0_i32_18 : i32
    %30 = arith.extui %29 : i1 to i32
    %c0_i32_19 = arith.constant 0 : i32
    %31 = arith.cmpi ne, %30, %c0_i32_19 : i32
    scf.if %31 {
      %c0_20 = arith.constant 0 : index
      %c0_21 = arith.constant 0 : index
      %32 = vector.load %arg8[%c0_20, %c0_21] : memref<16x32xf32, #tpu.memory_space<vmem>>, vector<16x32xf32>
      %c0_22 = arith.constant 0 : index
      %c0_23 = arith.constant 0 : index
      %33 = vector.load %arg7[%c0_22, %c0_23] : memref<16x32xf32, #tpu.memory_space<vmem>>, vector<16x32xf32>
      tpu.vector_store %arg7[%c0_22, %c0_23], %32 {strides = array<i32>} : memref<16x32xf32, #tpu.memory_space<vmem>>, vector<16x32xf32>,
    } else {
    }
    return
  }
  func.func @transform_0(%arg0: i32, %arg1: i32) -> (i32, i32) {
    %c0_i32 = arith.constant 0 : i32
    %c0_i32_0 = arith.constant 0 : i32
    return %arg0, %c0_i32 : i32, i32
  }
  func.func @transform_1(%arg0: i32, %arg1: i32) -> (i32, i32) {
    %c0_i32 = arith.constant 0 : i32
    %c0_i32_0 = arith.constant 0 : i32
    return %c0_i32, %arg1 : i32, i32
  }
  func.func @transform_2(%arg0: i32, %arg1: i32) -> (i32, i32) {
    %c0_i32 = arith.constant 0 : i32
    %c0_i32_0 = arith.constant 0 : i32
    return %c0_i32, %arg1 : i32, i32
  }
  func.func @transform_3(%arg0: i32, %arg1: i32) -> (i32, i32) {
    %c0_i32 = arith.constant 0 : i32
    %c0_i32_0 = arith.constant 0 : i32
    return %arg1, %c0_i32 : i32, i32
  }
  func.func @transform_4(%arg0: i32, %arg1: i32) -> (i32, i32) {
    %c0_i32 = arith.constant 0 : i32
    %c0_i32_0 = arith.constant 0 : i32
    %c0_i32_1 = arith.constant 0 : i32
    return %c0_i32, %c0_i32_0 : i32, i32
  }
  func.func @transform_5(%arg0: i32, %arg1: i32) -> (i32, i32) {
    %c0_i32 = arith.constant 0 : i32
    %c0_i32_0 = arith.constant 0 : i32
    return %arg0, %c0_i32 : i32, i32
  }
}

</mosaic_0001>

<llo_original>
// kernel: tpu_custom_call.1
$region0: #{tpu_custom_call.1}
  #allocation0 [shape = 'u32[]', space=smem, size = 0x4, offset = 0x4, fixed_abs, tag = 'smem constant byte address 0x4 - core index']
  #allocation1 [shape = 'u32[144,128]{1,0:T(1,128)}', space=vmem, size = 0x12000, scoped, tag = 'internal scratch']
  #allocation2 [shape = 'f32[16,32]{1,0:T(8,128)}', space=vmem, size = 0x2000, scoped, tag = 'scratch operand']
  %s0 = inlined_call_operand.vmem [shape: bf16[16,32], index: 0, kind: input, shape index: {}]
  %s1 = inlined_call_operand.vmem [shape: bf16[32,128], index: 1, kind: input, shape index: {}]
  %s2 = inlined_call_operand.vmem [shape: f32[1,128], index: 2, kind: input, shape index: {}]
  %s3 = inlined_call_operand.vmem [shape: bf16[128,32], index: 3, kind: input, shape index: {}]
  %s4 = inlined_call_operand.vmem [shape: f32[1,32], index: 4, kind: input, shape index: {}]
  %s5 = inlined_call_operand.hbm [shape: f32[16,32], index: 5, kind: output, shape index: {}]
  %s6 = sld [smem:[#allocation0]]
  $region38: #{tpu_custom_call.1} parent=0
    _
  %s8 = ssub.s32 1, %s6
  %s9 = scalar_select 0, %s8, %s6
  $region1: #{tpu_custom_call.1} parent=0
    #allocation3 [shape = 'u8[8192]{0}', space=vmem, size = 0x2000, scoped, tag = 'output window, operand 0, single buffered']
    #allocation4 [shape = 's32[1]{0}', space=sflag, size = 0x4, scoped, tag = 'scoped memory for tpu_custom_call.1']
    %10 = vsyncpa [#allocation4], 0
    // Predicated region
    $region2: #{tpu_custom_call.1} parent=1 // pred_check
      _
    $region3: #{tpu_custom_call.1} parent=1 // pred_check_branch
      %12 = sbr.rel (0) target = $region5
    $region4: #{tpu_custom_call.1} parent=1 // pred_region
      _
    $region5: #{tpu_custom_call.1} parent=1 // pred_fallthru
      _
    // Predicated region
    $region6: #{tpu_custom_call.1} parent=1 // pred_check
      _
    $region7: #{tpu_custom_call.1} parent=1 // pred_check_branch
      %14 = sbr.rel (0) target = $region9
    $region8: #{tpu_custom_call.1} parent=1 // pred_region
      _
    $region9: #{tpu_custom_call.1} parent=1 // pred_fallthru
      _
    // Predicated region
    $region10: #{tpu_custom_call.1} parent=1 // pred_check
      _
    $region11: #{tpu_custom_call.1} parent=1 // pred_check_branch
      %16 = sbr.rel (0) target = $region13
    $region12: #{tpu_custom_call.1} parent=1 // pred_region
      _
    $region13: #{tpu_custom_call.1} parent=1 // pred_fallthru
      _
    // Predicated region
    $region14: #{tpu_custom_call.1} parent=1 // pred_check
      _
    $region15: #{tpu_custom_call.1} parent=1 // pred_check_branch
      %18 = sbr.rel (0) target = $region17
    $region16: #{tpu_custom_call.1} parent=1 // pred_region
      _
    $region17: #{tpu_custom_call.1} parent=1 // pred_fallthru
      _
    // Predicated region
    $region18: #{tpu_custom_call.1} parent=1 // pred_check
      _
    $region19: #{tpu_custom_call.1} parent=1 // pred_check_branch
      %20 = sbr.rel (0) target = $region21
    $region20: #{tpu_custom_call.1} parent=1 // pred_region
      _
    $region21: #{tpu_custom_call.1} parent=1 // pred_fallthru
      _
    %p22 = scmp.eq.s32.totalorder 0, 0
    // Predicated region
    $region22: #{tpu_custom_call.1} parent=1 // pred_check
      %p23 = pneg %p22
    $region23: #{tpu_custom_call.1} parent=1 // pred_check_branch
      %25 = sbr.rel (%p23) target = $region25
    $region24: #{tpu_custom_call.1} parent=1 // pred_region
      %v26 = vld [vmem:[%s4] sm:$0x1]
      %v28 = vlaneseq
      %v29 = vshrl.u32 %v28, 7
      %v30 = vsub.s32 0, %v29
      %v31 = vrot.slane %v26, %v30
      %vm33 = vcmask 261120
      %34 = vst.msk [vmem:[#allocation2] sm:$0xff] %vm33, %v31
      %35 = vst.msk [vmem:[#allocation2 + $0x8] sm:$0xff] %vm33, %v31
    $region25: #{tpu_custom_call.1} parent=1 // pred_fallthru
      _
    %v36 = vld [vmem:[%s0] sm:$0xf]
    %v37 = vld [vmem:[%s0 + $0x4] sm:$0xf]
    %v38 = vld [vmem:[%s1] sm:$0xf]
    %v39 = vld [vmem:[%s1 + $0x4] sm:$0xf]
    %v40 = vld [vmem:[%s1 + $0x8] sm:$0xf]
    %v41 = vld [vmem:[%s1 + $0xc] sm:$0xf]
    %v42 = vld [vmem:[%s2] sm:$0x1]
    %v44 = vlaneseq
    %v45 = vshrl.u32 %v44, 7
    %v46 = vsub.s32 0, %v45
    %v47 = vrot.slane %v42, %v46
    %v51 = vunpack.c.l.b16 %v36
    %v52 = vunpack.c.l.b16 %v37
    %v53 = vpack.c.b16 %v52, %v51
    %v58 = vunpack.c.l.b16 %v38
    %v59 = vunpack.c.l.b16 %v39
    %v60 = vunpack.c.l.b16 %v40
    %v61 = vunpack.c.l.b16 %v41
    %v62 = vpack.c.b16 %v59, %v58
    %v63 = vpack.c.b16 %v61, %v60
    %vm66 = vcmask 261120
    %v68 = vsel %vm66, %v53, 0
    %70 = vmatprep.subr.bf16.mxu0 0
    %71 = vmatpush1.bf16.msra.mxu0 0
    %72 = vmatprep.subr.bf16.mxu0 0
    %73 = vmatpush1.bf16.msra.mxu0 0
    %74 = vmatprep.subr.bf16.mxu0 0
    %75 = vmatpush1.bf16.msra.mxu0 0
    %76 = vmatprep.subr.bf16.mxu0 0
    %77 = vmatpush1.bf16.msra.mxu0 0
    %78 = vmatprep.subr.bf16.mxu0 0
    %79 = vmatpush1.bf16.msra.mxu0 0
    %80 = vmatprep.subr.bf16.mxu0 0
    %81 = vmatpush1.bf16.msra.mxu0 0
    %82 = vmatprep.subr.bf16.mxu0 0
    %83 = vmatpush1.bf16.msra.mxu0 %v63
    %84 = vmatprep.subr.bf16.mxu0 0
    %85 = vmatpush1.bf16.msra.mxu0 %v62
    %86 = vmatprep.subr.bf16.mxu0 0
    %87 = vmatpush2.bf16.msra.mxu0 0
    %88 = vmatprep.subr.bf16.mxu0 0
    %89 = vmatpush2.bf16.msra.mxu0 0
    %90 = vmatprep.subr.bf16.mxu0 0
    %91 = vmatpush2.bf16.msra.mxu0 0
    %92 = vmatprep.subr.bf16.mxu0 0
    %93 = vmatpush2.bf16.msra.mxu0 0
    %94 = vmatprep.subr.bf16.mxu0 0
    %95 = vmatpush2.bf16.msra.mxu0 0
    %96 = vmatprep.subr.bf16.mxu0 0
    %97 = vmatpush2.bf16.msra.mxu0 0
    %98 = vmatprep.subr.bf16.mxu0 0
    %99 = vmatpush2.bf16.msra.mxu0 0
    %100 = vmatprep.subr.bf16.mxu0 0
    %101 = vmatpush2.bf16.msra.mxu0 0
    %102 = vmatprep.mubr.bf16.mxu0 0
    %103 = vmatmul.mubr.bf16.gmra.mxu0 %v68
    %v104 = vpop.f32.mrf.mxu0
    %v105 = vadd.f32 %v47, %v104
    %v106 = vpop.f32.mrf.mxu0
    %v107 = vpop.f32.mrf.mxu0
    %v108 = vadd.f32 %v47, %v107
    %v109 = vpop.f32.mrf.mxu0
    %110 = vdwg.mxu0
    %v111 = vmul.f32 %v105, 0.5
    %v112 = vmul.f32 %v108, 0.5
    %v113 = vmul.f32 %v105, 0.7978846
    %v114 = vmul.f32 %v108, 0.7978846
    %v115 = vmul.f32 %v105, 0.044715
    %v116 = vmul.f32 %v108, 0.044715
    %v117 = vmul.f32 %v115, %v105
    %v118 = vmul.f32 %v116, %v108
    %v119 = vadd.f32 %v117, 1.0
    %v120 = vadd.f32 %v118, 1.0
    %v121 = vmul.f32 %v113, %v119
    %v122 = vmul.f32 %v114, %v120
    %v123 = vtanh.pop %v121
    %v124 = vtanh.pop %v122
    %v125 = vadd.f32 %v123, 1.0
    %v126 = vadd.f32 %v124, 1.0
    %v127 = vmul.f32 %v111, %v125
    %v128 = vmul.f32 %v112, %v126
    %v129 = vld [vmem:[#allocation2] sm:$0xff]
    %v130 = vld [vmem:[#allocation2 + $0x8] sm:$0xff]
    %v131 = vpack.c.bf16 %v128, %v127
    %v132 = vld [vmem:[%s3] sm:$0xf]
    %v133 = vld [vmem:[%s3 + $0x4] sm:$0xf]
    %v134 = vld [vmem:[%s3 + $0x8] sm:$0xf]
    %v135 = vld [vmem:[%s3 + $0xc] sm:$0xf]
    %v136 = vld [vmem:[%s3 + $0x10] sm:$0xf]
    %v137 = vld [vmem:[%s3 + $0x14] sm:$0xf]
    %v138 = vld [vmem:[%s3 + $0x18] sm:$0xf]
    %v139 = vld [vmem:[%s3 + $0x1c] sm:$0xf]
    %v140 = vld [vmem:[%s3 + $0x20] sm:$0xf]
    %v141 = vld [vmem:[%s3 + $0x24] sm:$0xf]
    %v142 = vld [vmem:[%s3 + $0x28] sm:$0xf]
    %v143 = vld [vmem:[%s3 + $0x2c] sm:$0xf]
    %v144 = vld [vmem:[%s3 + $0x30] sm:$0xf]
    %v145 = vld [vmem:[%s3 + $0x34] sm:$0xf]
    %v146 = vld [vmem:[%s3 + $0x38] sm:$0xf]
    %v147 = vld [vmem:[%s3 + $0x3c] sm:$0xf]
    %v164 = vunpack.c.l.b16 %v132
    %v165 = vunpack.c.l.b16 %v133
    %v166 = vunpack.c.l.b16 %v134
    %v167 = vunpack.c.l.b16 %v135
    %v168 = vunpack.c.l.b16 %v136
    %v169 = vunpack.c.l.b16 %v137
    %v170 = vunpack.c.l.b16 %v138
    %v171 = vunpack.c.l.b16 %v139
    %v172 = vunpack.c.l.b16 %v140
    %v173 = vunpack.c.l.b16 %v141
    %v174 = vunpack.c.l.b16 %v142
    %v175 = vunpack.c.l.b16 %v143
    %v176 = vunpack.c.l.b16 %v144
    %v177 = vunpack.c.l.b16 %v145
    %v178 = vunpack.c.l.b16 %v146
    %v179 = vunpack.c.l.b16 %v147
    %v180 = vpack.c.b16 %v165, %v164
    %v181 = vpack.c.b16 %v167, %v166
    %v182 = vpack.c.b16 %v169, %v168
    %v183 = vpack.c.b16 %v171, %v170
    %v184 = vpack.c.b16 %v173, %v172
    %v185 = vpack.c.b16 %v175, %v174
    %v186 = vpack.c.b16 %v177, %v176
    %v187 = vpack.c.b16 %v179, %v178
    %196 = vmatprep.subr.bf16.mxu0 0
    %197 = vmatpush1.bf16.msra.mxu0 %v187
    %198 = vmatprep.subr.bf16.mxu0 0
    %199 = vmatpush1.bf16.msra.mxu0 %v186
    %200 = vmatprep.subr.bf16.mxu0 0
    %201 = vmatpush1.bf16.msra.mxu0 %v185
    %202 = vmatprep.subr.bf16.mxu0 0
    %203 = vmatpush1.bf16.msra.mxu0 %v184
    %204 = vmatprep.subr.bf16.mxu0 0
    %205 = vmatpush1.bf16.msra.mxu0 %v183
    %206 = vmatprep.subr.bf16.mxu0 0
    %207 = vmatpush1.bf16.msra.mxu0 %v182
    %208 = vmatprep.subr.bf16.mxu0 0
    %209 = vmatpush1.bf16.msra.mxu0 %v181
    %210 = vmatprep.subr.bf16.mxu0 0
    %211 = vmatpush1.bf16.msra.mxu0 %v180
    %212 = vmatprep.subr.bf16.mxu0 0
    %213 = vmatpush2.bf16.msra.mxu0 0
    %214 = vmatprep.subr.bf16.mxu0 0
    %215 = vmatpush2.bf16.msra.mxu0 0
    %216 = vmatprep.subr.bf16.mxu0 0
    %217 = vmatpush2.bf16.msra.mxu0 0
    %218 = vmatprep.subr.bf16.mxu0 0
    %219 = vmatpush2.bf16.msra.mxu0 0
    %220 = vmatprep.subr.bf16.mxu0 0
    %221 = vmatpush2.bf16.msra.mxu0 0
    %222 = vmatprep.subr.bf16.mxu0 0
    %223 = vmatpush2.bf16.msra.mxu0 0
    %224 = vmatprep.subr.bf16.mxu0 0
    %225 = vmatpush2.bf16.msra.mxu0 0
    %226 = vmatprep.subr.bf16.mxu0 0
    %227 = vmatpush2.bf16.msra.mxu0 0
    %228 = vmatprep.mubr.bf16.mxu0 0
    %229 = vmatmul.mubr.bf16.gmra.mxu0 %v131
    %v230 = vpop.f32.mrf.mxu0
    %v231 = vadd.f32 0.0, %v230
    %v232 = vpop.f32.mrf.mxu0
    %v233 = vpop.f32.mrf.mxu0
    %v234 = vadd.f32 0.0, %v233
    %v235 = vpop.f32.mrf.mxu0
    %236 = vdwg.mxu0
    %v237 = vadd.f32 %v129, %v231
    %v238 = vadd.f32 %v130, %v234
    %239 = vst.msk [vmem:[#allocation2] sm:$0xff] %vm66, %v237
    %240 = vst.msk [vmem:[#allocation2 + $0x8] sm:$0xff] %vm66, %v238
    // Predicated region
    $region26: #{tpu_custom_call.1} parent=1 // pred_check
      %p241 = pneg %p22
    $region27: #{tpu_custom_call.1} parent=1 // pred_check_branch
      %243 = sbr.rel (%p241) target = $region29
    $region28: #{tpu_custom_call.1} parent=1 // pred_region
      %v244 = vld [vmem:[#allocation2] sm:$0xff]
      %v245 = vld [vmem:[#allocation2 + $0x8] sm:$0xff]
      %246 = vst.msk [vmem:[#allocation3] sm:$0xff] %vm66, %v244
      %247 = vst.msk [vmem:[#allocation3 + $0x8] sm:$0xff] %vm66, %v245
    $region29: #{tpu_custom_call.1} parent=1 // pred_fallthru
      _
    // Predicated region
    $region30: #{tpu_custom_call.1} parent=1 // pred_check
      _
    $region31: #{tpu_custom_call.1} parent=1 // pred_check_branch
      %249 = sbr.rel (0) target = $region33
    $region32: #{tpu_custom_call.1} parent=1 // pred_region
      %s251 = ssub.s32 256, 256
      %252 = vsyncadd [#allocation4], %s251
      %s253 = sshll.u32 [#allocation3], 4
      %s254 = int_to_ptr.vmem [resolvable:$true] %s253
      %259 = dma.vmem_to_hbm [thread:$0]  %s254, 256, %s5, [#allocation4], 128, 128, 8
    $region33: #{tpu_custom_call.1} parent=1 // pred_fallthru
      _
    // Predicated region
    $region34: #{tpu_custom_call.1} parent=1 // pred_check
      _
    $region35: #{tpu_custom_call.1} parent=1 // pred_check_branch
      %261 = sbr.rel (0) target = $region37
    $region36: #{tpu_custom_call.1} parent=1 // pred_region
      %262 = dma.done [#allocation4], 256
    $region37: #{tpu_custom_call.1} parent=1 // pred_fallthru
      _
    %263 = vsyncpa [#allocation4], 1

</llo_original>
